<compile_context>
chip_gen: v7x
topology: tpu7x:2x2x1
jax: 0.10.0
libtpu: 0.0.40
codegen_flags: <defaults>
</compile_context>

<pallas_src>
import functools
import math

import jax
import jax.numpy as jnp
from jax import lax
from jax.experimental import pallas as pl
from jax.experimental.pallas import tpu as pltpu


def _round_up(x, m):
    return ((x + m - 1) // m) * m


def _linear_bias_kernel(x_ref, w_ref, b_ref, o_ref, acc_ref):
    # x_ref: (tm, tk)  w_ref: (tn, tk)  b_ref: (1, tn)  o_ref: (tm, tn)
    # acc_ref: (tm, tn) f32 scratch, resident across the K axis.
    k = pl.program_id(2)

    @pl.when(k == 0)
    def _():
        # Fold bias into the accumulator init -> applied exactly once.
        acc_ref[...] = jnp.broadcast_to(
            b_ref[...].astype(jnp.float32), acc_ref.shape)

    # Contract x (tm, tk) with PyTorch-layout weight (tn, tk) on the K axis.
    acc_ref[...] += lax.dot_general(
        x_ref[...], w_ref[...],
        dimension_numbers=(((1,), (1,)), ((), ())),
        preferred_element_type=jnp.float32)

    @pl.when(k == pl.num_programs(2) - 1)
    def _():
        o_ref[...] = acc_ref[...].astype(o_ref.dtype)


def _linear_nobias_kernel(x_ref, w_ref, o_ref, acc_ref):
    k = pl.program_id(2)

    @pl.when(k == 0)
    def _():
        acc_ref[...] = jnp.zeros_like(acc_ref)

    acc_ref[...] += lax.dot_general(
        x_ref[...], w_ref[...],
        dimension_numbers=(((1,), (1,)), ((), ())),
        preferred_element_type=jnp.float32)

    @pl.when(k == pl.num_programs(2) - 1)
    def _():
        o_ref[...] = acc_ref[...].astype(o_ref.dtype)


@functools.partial(jax.jit, static_argnames=("tm", "tn", "tk"))
def linear_forward(x, weight, bias=None, *, tm=256, tn=512, tk=512):
    """Pallas TPU equivalent of torch.nn.Linear.forward.

    x:      (M, in_features)
    weight: (out_features, in_features)   -- PyTorch layout, never transposed
    bias:   (out_features,) or None
    returns (M, out_features) in x.dtype
    """
    M, K = x.shape
    N, K2 = weight.shape
    assert K == K2, "in_features mismatch"

    # Clamp tiles to the (aligned) problem size; keep (8,128) alignment and a
    # lane-dense output (tn multiple of 128).
    tm = min(tm, _round_up(M, 8))
    tn = min(tn, _round_up(N, 128))
    tk = min(tk, _round_up(K, 128))

    Mp = _round_up(M, tm)
    Np = _round_up(N, tn)
    Kp = _round_up(K, tk)

    # Zero-pad so every grid tile is full: padded K rows contribute 0 to the
    # accumulation, padded M/N rows/cols are sliced off afterwards.
    xp = x
    if (Mp, Kp) != (M, K):
        xp = jnp.zeros((Mp, Kp), x.dtype).at[:M, :K].set(x)
    wp = weight
    if (Np, Kp) != (N, K):
        wp = jnp.zeros((Np, Kp), weight.dtype).at[:N, :K].set(weight)

    grid = (Mp // tm, Np // tn, Kp // tk)

    x_spec = pl.BlockSpec((tm, tk), lambda i, j, k: (i, k))
    w_spec = pl.BlockSpec((tn, tk), lambda i, j, k: (j, k))
    out_spec = pl.BlockSpec((tm, tn), lambda i, j, k: (i, j))
    out_shape = jax.ShapeDtypeStruct((Mp, Np), x.dtype)
    scratch = [pltpu.VMEM((tm, tn), jnp.float32)]

    itemsize = x.dtype.itemsize
    cost = pl.CostEstimate(
        flops=2 * M * N * K,
        transcendentals=0,
        bytes_accessed=(M * K + N * K + M * N
                        + (N if bias is not None else 0)) * itemsize,
    )

    # Double-buffered x/w/out tiles + f32 accumulator + headroom; stays well
    # under the 64 MiB v7x physical VMEM (and the smaller scoped defaults).
    tile_bytes = (2 * (tm * tk + tn * tk) * itemsize
                  + 2 * tm * tn * itemsize
                  + tm * tn * 4)
    vmem_limit = min(tile_bytes + (16 << 20), 48 << 20)

    cparams = pltpu.CompilerParams(
        dimension_semantics=("parallel", "parallel", "arbitrary"),
        vmem_limit_bytes=vmem_limit,
    )

    if bias is None:
        out = pl.pallas_call(
            _linear_nobias_kernel,
            out_shape=out_shape,
            grid_spec=pltpu.PrefetchScalarGridSpec(
                num_scalar_prefetch=0,
                grid=grid,
                in_specs=[x_spec, w_spec],
                out_specs=out_spec,
                scratch_shapes=scratch,
            ),
            compiler_params=cparams,
            cost_estimate=cost,
        )(xp, wp)
    else:
        bp = bias
        if Np != N:
            bp = jnp.zeros((Np,), bias.dtype).at[:N].set(bias)
        bp = bp.reshape(1, Np)
        b_spec = pl.BlockSpec((1, tn), lambda i, j, k: (0, j))
        out = pl.pallas_call(
            _linear_bias_kernel,
            out_shape=out_shape,
            grid_spec=pltpu.PrefetchScalarGridSpec(
                num_scalar_prefetch=0,
                grid=grid,
                in_specs=[x_spec, w_spec, b_spec],
                out_specs=out_spec,
                scratch_shapes=scratch,
            ),
            compiler_params=cparams,
            cost_estimate=cost,
        )(xp, wp, bp)

    if (Mp, Np) != (M, N):
        out = out[:M, :N]
    return out


if __name__ == "__main__":
    # Module config: Linear(in_features=32, out_features=64, bias=True)
    in_features, out_features = 32, 64
    batch = 8

    key = jax.random.PRNGKey(0)
    kx, kw, kb = jax.random.split(key, 3)

    # Mirror reset_parameters(): U(-stdv, stdv), stdv = 1/sqrt(in_features)
    stdv = 1.0 / math.sqrt(in_features)
    weight = jax.random.uniform(
        kw, (out_features, in_features), jnp.float32, minval=-stdv, maxval=stdv)
    bias = jax.random.uniform(
        kb, (out_features,), jnp.float32, minval=-stdv, maxval=stdv)
    x = jax.random.normal(kx, (batch, in_features), jnp.float32)

    # Bias case (main spec case).
    y = jax.block_until_ready(linear_forward(x, weight, bias))
    y_ref = x @ weight.T + bias[None, :]
    assert y.shape == (batch, out_features)
    assert jnp.allclose(y, y_ref, atol=1e-5, rtol=1e-5), "bias case mismatch"

    # No-bias case.
    y2 = jax.block_until_ready(linear_forward(x, weight, None))
    assert jnp.allclose(y2, x @ weight.T, atol=1e-5, rtol=1e-5), "no-bias mismatch"

    # Small multi-tile case to exercise the (M, N, K) grid + K accumulation.
    k2x, k2w, k2b = jax.random.split(jax.random.PRNGKey(1), 3)
    M2, K2, N2 = 20, 300, 200
    x2 = jax.random.normal(k2x, (M2, K2), jnp.float32)
    w2 = jax.random.normal(k2w, (N2, K2), jnp.float32) * 0.05
    b2 = jax.random.normal(k2b, (N2,), jnp.float32)
    y3 = jax.block_until_ready(
        linear_forward(x2, w2, b2, tm=8, tn=128, tk=128))
    y3_ref = x2 @ w2.T + b2[None, :]
    assert jnp.allclose(y3, y3_ref, atol=1e-4, rtol=1e-4), "tiled case mismatch"

    print("KERNEL_OK")
</pallas_src>

<mosaic_0001>
module attributes {stable_mosaic.version = 11 : i64} {
  func.func @_linear_bias_kernel(%arg0: i32, %arg1: i32, %arg2: i32, %arg3: memref<8x128xf32, #tpu.memory_space<vmem>>, %arg4: memref<128x128xf32, #tpu.memory_space<vmem>>, %arg5: memref<1x128xf32, #tpu.memory_space<vmem>>, %arg6: memref<8x128xf32, #tpu.memory_space<vmem>>, %arg7: memref<8x128xf32, #tpu.memory_space<vmem>>) attributes {dimension_semantics = [#tpu.dimension_semantics<parallel>, #tpu.dimension_semantics<parallel>, #tpu.dimension_semantics<arbitrary>], iteration_bounds = array<i64: 1, 1, 1>, scalar_prefetch = 0 : i64, scratch_operands = 1 : i64, tpu.core_type = #tpu.core_type<tc>, window_params = [{transform_indices = @transform_0, window_bounds = array<i64: 8, 128>}, {transform_indices = @transform_1, window_bounds = array<i64: 128, 128>}, {transform_indices = @transform_2, window_bounds = array<i64: 1, 128>}, {transform_indices = @transform_3, window_bounds = array<i64: 8, 128>}]} {
    %c0_i32 = arith.constant 0 : i32
    %0 = arith.cmpi eq, %arg2, %c0_i32 : i32
    %1 = arith.extui %0 : i1 to i32
    %c0_i32_0 = arith.constant 0 : i32
    %2 = arith.cmpi ne, %1, %c0_i32_0 : i32
    scf.if %2 {
      %c0_10 = arith.constant 0 : index
      %c0_11 = arith.constant 0 : index
      %12 = vector.load %arg5[%c0_10, %c0_11] : memref<1x128xf32, #tpu.memory_space<vmem>>, vector<1x128xf32>
      %13 = vector.shape_cast %12 : vector<1x128xf32> to vector<1x128xf32>
      %14 = vector.broadcast %13 : vector<1x128xf32> to vector<8x128xf32>
      %c0_12 = arith.constant 0 : index
      %c0_13 = arith.constant 0 : index
      %15 = vector.load %arg7[%c0_12, %c0_13] : memref<8x128xf32, #tpu.memory_space<vmem>>, vector<8x128xf32>
      tpu.vector_store %arg7[%c0_12, %c0_13], %14 {strides = array<i32>} : memref<8x128xf32, #tpu.memory_space<vmem>>, vector<8x128xf32>,
    } else {
    }
    %c0 = arith.constant 0 : index
    %c0_1 = arith.constant 0 : index
    %3 = vector.load %arg7[%c0, %c0_1] : memref<8x128xf32, #tpu.memory_space<vmem>>, vector<8x128xf32>
    %c0_2 = arith.constant 0 : index
    %c0_3 = arith.constant 0 : index
    %4 = vector.load %arg3[%c0_2, %c0_3] : memref<8x128xf32, #tpu.memory_space<vmem>>, vector<8x128xf32>
    %c0_4 = arith.constant 0 : index
    %c0_5 = arith.constant 0 : index
    %5 = vector.load %arg4[%c0_4, %c0_5] : memref<128x128xf32, #tpu.memory_space<vmem>>, vector<128x128xf32>
    %cst = arith.constant dense<0.000000e+00> : vector<8x128xf32>
    %6 = tpu.matmul %4, %5, %cst {dimension_numbers = #tpu.dot_dimension_numbers<[1], [1], [0], [0], [0, 0, 1, 0], [], []>} : vector<8x128xf32>, vector<128x128xf32>, vector<8x128xf32> -> vector<8x128xf32>
    %7 = arith.addf %3, %6 : vector<8x128xf32>
    %c0_6 = arith.constant 0 : index
    %c0_7 = arith.constant 0 : index
    %8 = vector.load %arg7[%c0_6, %c0_7] : memref<8x128xf32, #tpu.memory_space<vmem>>, vector<8x128xf32>
    tpu.vector_store %arg7[%c0_6, %c0_7], %7 {strides = array<i32>} : memref<8x128xf32, #tpu.memory_space<vmem>>, vector<8x128xf32>,
    %c0_i32_8 = arith.constant 0 : i32
    %9 = arith.cmpi eq, %arg2, %c0_i32_8 : i32
    %10 = arith.extui %9 : i1 to i32
    %c0_i32_9 = arith.constant 0 : i32
    %11 = arith.cmpi ne, %10, %c0_i32_9 : i32
    scf.if %11 {
      %c0_10 = arith.constant 0 : index
      %c0_11 = arith.constant 0 : index
      %12 = vector.load %arg7[%c0_10, %c0_11] : memref<8x128xf32, #tpu.memory_space<vmem>>, vector<8x128xf32>
      %c0_12 = arith.constant 0 : index
      %c0_13 = arith.constant 0 : index
      %13 = vector.load %arg6[%c0_12, %c0_13] : memref<8x128xf32, #tpu.memory_space<vmem>>, vector<8x128xf32>
      tpu.vector_store %arg6[%c0_12, %c0_13], %12 {strides = array<i32>} : memref<8x128xf32, #tpu.memory_space<vmem>>, vector<8x128xf32>,
    } else {
    }
    return
  }
  func.func @transform_0(%arg0: i32, %arg1: i32, %arg2: i32) -> (i32, i32) {
    %c0_i32 = arith.constant 0 : i32
    return %arg0, %arg2 : i32, i32
  }
  func.func @transform_1(%arg0: i32, %arg1: i32, %arg2: i32) -> (i32, i32) {
    %c0_i32 = arith.constant 0 : i32
    return %arg1, %arg2 : i32, i32
  }
  func.func @transform_2(%arg0: i32, %arg1: i32, %arg2: i32) -> (i32, i32) {
    %c0_i32 = arith.constant 0 : i32
    %c0_i32_0 = arith.constant 0 : i32
    return %c0_i32, %arg1 : i32, i32
  }
  func.func @transform_3(%arg0: i32, %arg1: i32, %arg2: i32) -> (i32, i32) {
    %c0_i32 = arith.constant 0 : i32
    return %arg0, %arg1 : i32, i32
  }
}

</mosaic_0001>

<llo_original>
// kernel: linear_forward.1
$region0: #{linear_forward.1}
  #allocation0 [shape = 'u32[]', space=smem, size = 0x4, offset = 0x4, fixed_abs, tag = 'smem constant byte address 0x4 - core index']
  #allocation1 [shape = 'u32[144,128]{1,0:T(1,128)}', space=vmem, size = 0x12000, scoped, tag = 'internal scratch']
  #allocation2 [shape = 'f32[8,128]{1,0:T(8,128)}', space=vmem, size = 0x1000, scoped, tag = 'scratch operand']
  %s0 = inlined_call_operand.vmem [shape: f32[8,128], index: 0, kind: input, shape index: {}]
  %s1 = inlined_call_operand.vmem [shape: f32[128,128], index: 1, kind: input, shape index: {}]
  %s2 = inlined_call_operand.vmem [shape: f32[1,128], index: 2, kind: input, shape index: {}]
  %s3 = inlined_call_operand.hbm [shape: f32[8,128], index: 3, kind: output, shape index: {}]
  %s4 = sld [smem:[#allocation0]]
  $region30: #{linear_forward.1} parent=0
    _
  %s6 = ssub.s32 1, %s4
  %s7 = scalar_select 0, %s6, %s4
  $region1: #{linear_forward.1} parent=0
    #allocation3 [shape = 'u8[4096]{0}', space=vmem, size = 0x1000, scoped, tag = 'output window, operand 0, single buffered']
    #allocation4 [shape = 's32[1]{0}', space=sflag, size = 0x4, scoped, tag = 'scoped memory for linear_forward.1']
    %8 = vsyncpa [#allocation4], 0
    // Predicated region
    $region2: #{linear_forward.1} parent=1 // pred_check
      _
    $region3: #{linear_forward.1} parent=1 // pred_check_branch
      %10 = sbr.rel (0) target = $region5
    $region4: #{linear_forward.1} parent=1 // pred_region
      _
    $region5: #{linear_forward.1} parent=1 // pred_fallthru
      _
    // Predicated region
    $region6: #{linear_forward.1} parent=1 // pred_check
      _
    $region7: #{linear_forward.1} parent=1 // pred_check_branch
      %12 = sbr.rel (0) target = $region9
    $region8: #{linear_forward.1} parent=1 // pred_region
      _
    $region9: #{linear_forward.1} parent=1 // pred_fallthru
      _
    // Predicated region
    $region10: #{linear_forward.1} parent=1 // pred_check
      _
    $region11: #{linear_forward.1} parent=1 // pred_check_branch
      %14 = sbr.rel (0) target = $region13
    $region12: #{linear_forward.1} parent=1 // pred_region
      _
    $region13: #{linear_forward.1} parent=1 // pred_fallthru
      _
    %p15 = scmp.eq.s32.totalorder 0, 0
    // Predicated region
    $region14: #{linear_forward.1} parent=1 // pred_check
      %p16 = pneg %p15
    $region15: #{linear_forward.1} parent=1 // pred_check_branch
      %18 = sbr.rel (%p16) target = $region17
    $region16: #{linear_forward.1} parent=1 // pred_region
      %v19 = vld [vmem:[%s2] sm:$0x1]
      %v21 = vlaneseq
      %v22 = vshrl.u32 %v21, 7
      %v23 = vsub.s32 0, %v22
      %v24 = vrot.slane %v19, %v23
      %26 = vst [vmem:[#allocation2] sm:$0xff] %v24
    $region17: #{linear_forward.1} parent=1 // pred_fallthru
      _
    %v27 = vld [vmem:[#allocation2] sm:$0xff]
    %v28 = vld [vmem:[%s0] sm:$0xff]
    %v29 = vld [vmem:[%s1] sm:$0xff]
    %v30 = vld [vmem:[%s1 + $0x8] sm:$0xff]
    %v31 = vld [vmem:[%s1 + $0x10] sm:$0xff]
    %v32 = vld [vmem:[%s1 + $0x18] sm:$0xff]
    %v33 = vld [vmem:[%s1 + $0x20] sm:$0xff]
    %v34 = vld [vmem:[%s1 + $0x28] sm:$0xff]
    %v35 = vld [vmem:[%s1 + $0x30] sm:$0xff]
    %v36 = vld [vmem:[%s1 + $0x38] sm:$0xff]
    %v37 = vld [vmem:[%s1 + $0x40] sm:$0xff]
    %v38 = vld [vmem:[%s1 + $0x48] sm:$0xff]
    %v39 = vld [vmem:[%s1 + $0x50] sm:$0xff]
    %v40 = vld [vmem:[%s1 + $0x58] sm:$0xff]
    %v41 = vld [vmem:[%s1 + $0x60] sm:$0xff]
    %v42 = vld [vmem:[%s1 + $0x68] sm:$0xff]
    %v43 = vld [vmem:[%s1 + $0x70] sm:$0xff]
    %v44 = vld [vmem:[%s1 + $0x78] sm:$0xff]
    %45 = vmatprep.subr.mxu0 0.0
    %46 = vmatpush1.xpose.msra.mxu0 %v29
    %47 = vmatprep.subr.mxu0 0.0
    %48 = vmatpush1.xpose.msra.mxu0 %v30
    %49 = vmatprep.subr.mxu0 0.0
    %50 = vmatpush1.xpose.msra.mxu0 %v31
    %51 = vmatprep.subr.mxu0 0.0
    %52 = vmatpush1.xpose.msra.mxu0 %v32
    %53 = vmatprep.subr.mxu0 0.0
    %54 = vmatpush1.xpose.msra.mxu0 %v33
    %55 = vmatprep.subr.mxu0 0.0
    %56 = vmatpush1.xpose.msra.mxu0 %v34
    %57 = vmatprep.subr.mxu0 0.0
    %58 = vmatpush1.xpose.msra.mxu0 %v35
    %59 = vmatprep.subr.mxu0 0.0
    %60 = vmatpush1.xpose.msra.mxu0 %v36
    %61 = vmatprep.subr.mxu0 0.0
    %62 = vmatpush1.xpose.msra.mxu0 %v37
    %63 = vmatprep.subr.mxu0 0.0
    %64 = vmatpush1.xpose.msra.mxu0 %v38
    %65 = vmatprep.subr.mxu0 0.0
    %66 = vmatpush1.xpose.msra.mxu0 %v39
    %67 = vmatprep.subr.mxu0 0.0
    %68 = vmatpush1.xpose.msra.mxu0 %v40
    %69 = vmatprep.subr.mxu0 0.0
    %70 = vmatpush1.xpose.msra.mxu0 %v41
    %71 = vmatprep.subr.mxu0 0.0
    %72 = vmatpush1.xpose.msra.mxu0 %v42
    %73 = vmatprep.subr.mxu0 0.0
    %74 = vmatpush1.xpose.msra.mxu0 %v43
    %75 = vmatprep.subr.mxu0 0.0
    %76 = vmatpush1.xpose.msra.mxu0 %v44
    %77 = vmatprep.subr.mxu0 0.0
    %78 = vmatpush1.xpose.msra.mxu0 0.0
    %79 = vmatprep.subr.mxu0 0.0
    %80 = vmatpush1.xpose.msra.mxu0 0.0
    %81 = vmatprep.subr.mxu0 0.0
    %82 = vmatpush1.xpose.msra.mxu0 0.0
    %83 = vmatprep.subr.mxu0 0.0
    %84 = vmatpush1.xpose.msra.mxu0 0.0
    %85 = vmatprep.subr.mxu0 0.0
    %86 = vmatpush1.xpose.msra.mxu0 0.0
    %87 = vmatprep.subr.mxu0 0.0
    %88 = vmatpush1.xpose.msra.mxu0 0.0
    %89 = vmatprep.subr.mxu0 0.0
    %90 = vmatpush1.xpose.msra.mxu0 0.0
    %91 = vmatprep.subr.mxu0 0.0
    %92 = vmatpush1.xpose.msra.mxu0 0.0
    %93 = vmatprep.subr.mxu0 0.0
    %94 = vmatpush1.xpose.msra.mxu0 0.0
    %95 = vmatprep.subr.mxu0 0.0
    %96 = vmatpush1.xpose.msra.mxu0 0.0
    %97 = vmatprep.subr.mxu0 0.0
    %98 = vmatpush1.xpose.msra.mxu0 0.0
    %99 = vmatprep.subr.mxu0 0.0
    %100 = vmatpush1.xpose.msra.mxu0 0.0
    %101 = vmatprep.subr.mxu0 0.0
    %102 = vmatpush1.xpose.msra.mxu0 0.0
    %103 = vmatprep.subr.mxu0 0.0
    %104 = vmatpush1.xpose.msra.mxu0 0.0
    %105 = vmatprep.subr.mxu0 0.0
    %106 = vmatpush1.xpose.msra.mxu0 0.0
    %107 = vmatprep.subr.mxu0 0.0
    %108 = vmatpush1.xpose.msra.mxu0 0.0
    %109 = vmatprep.mubr.f32.mxu0 0.0
    %110 = vmatmul.mubr.f32.gmra.mrb[0].mxu0 %v28
    %v111 = vpop.f32.mrb[0].mxu0
    %v112 = vadd.f32 0.0, %v111
    %v113 = vpop.f32.mrb[0].mxu0
    %114 = vdwg.mxu0
    %v115 = vadd.f32 %v27, %v112
    %116 = vst [vmem:[#allocation2] sm:$0xff] %v115
    // Predicated region
    $region18: #{linear_forward.1} parent=1 // pred_check
      %p117 = pneg %p15
    $region19: #{linear_forward.1} parent=1 // pred_check_branch
      %119 = sbr.rel (%p117) target = $region21
    $region20: #{linear_forward.1} parent=1 // pred_region
      %v120 = vld [vmem:[#allocation2] sm:$0xff]
      %121 = vst [vmem:[#allocation3] sm:$0xff] %v120
    $region21: #{linear_forward.1} parent=1 // pred_fallthru
      _
    // Predicated region
    $region22: #{linear_forward.1} parent=1 // pred_check
      _
    $region23: #{linear_forward.1} parent=1 // pred_check_branch
      %123 = sbr.rel (0) target = $region25
    $region24: #{linear_forward.1} parent=1 // pred_region
      %s125 = ssub.s32 128, 128
      %126 = vsyncadd [#allocation4], %s125
      %s128 = sshll.u32 [#allocation3], 4
      %s129 = int_to_ptr.vmem [resolvable:$true] %s128
      %131 = dma.vmem_to_hbm [thread:$0]  %s129, 128, %s3, [#allocation4]
    $region25: #{linear_forward.1} parent=1 // pred_fallthru
      _
    // Predicated region
    $region26: #{linear_forward.1} parent=1 // pred_check
      _
    $region27: #{linear_forward.1} parent=1 // pred_check_branch
      %133 = sbr.rel (0) target = $region29
    $region28: #{linear_forward.1} parent=1 // pred_region
      %134 = dma.done [#allocation4], 128
    $region29: #{linear_forward.1} parent=1 // pred_fallthru
      _
    %135 = vsyncpa [#allocation4], 1

</llo_original>
